<compile_context>
chip_gen: v6e
topology: v6e:2x2x1
jax: 0.10.0
libtpu: 0.0.40
codegen_flags: <defaults>
</compile_context>

<pallas_src>
import functools

import jax
import jax.numpy as jnp
from jax.experimental import pallas as pl
from jax.experimental.pallas import tpu as pltpu


def conv_tanh_kernel(x_ref, w_ref, b_ref, o_ref, *, n_taps, k_w, in_width, m_cols):
    # x_ref: (1, C, H*W + pad) f32 VMEM  -- one image's flattened rows, zero-padded
    # w_ref: (O, n_taps*C)     f32 VMEM  -- fused weights, row order = tap-major, chan-minor
    # b_ref: (O, 1)            f32 VMEM
    # o_ref: (1, O, H*W)       f32 VMEM  -- column j = h*W + w
    xv = x_ref[0]                                   # (C, H*W + pad)

    # Fused im2col: stack the KH*KW shifted windows into one (n_taps*C, H*W) matrix.
    taps = []
    for idx in range(n_taps):
        kh, kw = idx // k_w, idx % k_w
        off = kh * in_width + kw                    # static offset
        taps.append(xv[:, off:off + m_cols])        # (C, H*W)
    patches = jnp.concatenate(taps, axis=0)         # (n_taps*C, H*W)

    # One MXU dot with K = n_taps*C, f32 accumulation, then bias + tanh (EUP).
    acc = jnp.dot(w_ref[...], patches, preferred_element_type=jnp.float32)
    o_ref[0] = jnp.tanh(acc + b_ref[...]).astype(o_ref.dtype)


@jax.jit
def conv2d_tanh(x_nchw, weight, bias):
    """nn.Conv2d (stride 1, no padding) followed by tanh; NCHW in / NCHW out."""
    N, C, H, W = x_nchw.shape
    O, _, KH, KW = weight.shape
    OH, OW = H - KH + 1, W - KW + 1

    M = H * W                            # per-image flattened spatial axis (lanes)
    pad = (KH - 1) * W + (KW - 1)        # largest tap offset
    Mp = M + pad
    K = KH * KW * C                      # fused contraction length

    # Free reshape (no transpose) + one small zero-pad on the last dim.
    x_flat = x_nchw.reshape(N, C, M)
    x_pad = jnp.pad(x_flat, ((0, 0), (0, 0), (0, pad)))

    # weight (O, C, KH, KW) -> (O, KH, KW, C) -> (O, KH*KW*C); row idx*C + c, idx = kh*KW + kw.
    w_fused = jnp.transpose(weight, (0, 2, 3, 1)).reshape(O, K)
    b_col = bias.reshape(O, 1)

    kernel = functools.partial(conv_tanh_kernel,
                               n_taps=KH * KW, k_w=KW, in_width=W, m_cols=M)

    out = pl.pallas_call(
        kernel,
        out_shape=jax.ShapeDtypeStruct((N, O, M), x_nchw.dtype),
        grid_spec=pltpu.PrefetchScalarGridSpec(
            num_scalar_prefetch=0,
            grid=(N,),
            in_specs=[
                pl.BlockSpec((1, C, Mp), lambda n: (n, 0, 0)),   # one image's slab
                pl.BlockSpec((O, K), lambda n: (0, 0)),          # fused weights
                pl.BlockSpec((O, 1), lambda n: (0, 0)),          # bias column
            ],
            out_specs=pl.BlockSpec((1, O, M), lambda n: (n, 0, 0)),
        ),
        compiler_params=pltpu.CompilerParams(dimension_semantics=("parallel",)),
    )(x_pad, w_fused, b_col)

    # Columns are h*W + w; valid conv outputs are h < OH, w < OW.
    return out.reshape(N, O, H, W)[:, :, :OH, :OW]


def make_params(key, in_ch=3, out_ch=32, ksize=2, dtype=jnp.float32):
    # Deterministic init mimicking PyTorch Conv2d default (uniform, bound = 1/sqrt(fan_in)).
    kw_key, kb_key = jax.random.split(key)
    fan_in = in_ch * ksize * ksize
    bound = 1.0 / jnp.sqrt(fan_in)
    weight = jax.random.uniform(kw_key, (out_ch, in_ch, ksize, ksize),
                                dtype=dtype, minval=-bound, maxval=bound)
    bias = jax.random.uniform(kb_key, (out_ch,), dtype=dtype,
                              minval=-bound, maxval=bound)
    return weight, bias


if __name__ == "__main__":
    key = jax.random.PRNGKey(0)
    kx, kp = jax.random.split(key)

    # Small shapes consistent with the module: batch=2, channels=3, spatial=16.
    x = jax.random.normal(kx, (2, 3, 16, 16), dtype=jnp.float32)
    weight, bias = make_params(kp)

    y = conv2d_tanh(x, weight, bias)
    y = jax.block_until_ready(y)
    assert y.shape == (2, 32, 15, 15), y.shape

    # Reference check against XLA conv + tanh.
    ref = jax.lax.conv_general_dilated(
        x, weight, window_strides=(1, 1), padding="VALID",
        dimension_numbers=("NCHW", "OIHW", "NCHW"))
    ref = jnp.tanh(ref + bias.reshape(1, -1, 1, 1))
    assert jnp.allclose(y, ref, atol=1e-5, rtol=1e-5), "mismatch vs reference"

    print("KERNEL_OK")
</pallas_src>

<mosaic_0001>
module attributes {stable_mosaic.version = 11 : i64} {
  func.func @conv_tanh_kernel(%arg0: i32, %arg1: memref<1x3x273xf32, #tpu.memory_space<vmem>>, %arg2: memref<32x12xf32, #tpu.memory_space<vmem>>, %arg3: memref<32x1xf32, #tpu.memory_space<vmem>>, %arg4: memref<1x32x256xf32, #tpu.memory_space<vmem>>) attributes {dimension_semantics = [#tpu.dimension_semantics<parallel>], iteration_bounds = array<i64: 2>, scalar_prefetch = 0 : i64, scratch_operands = 0 : i64, tpu.core_type = #tpu.core_type<tc>, window_params = [{transform_indices = @transform_0, window_bounds = array<i64: 1, 3, 273>}, {pipeline_mode = #tpu.pipeline_mode<synchronous>, transform_indices = @transform_1, window_bounds = array<i64: 32, 12>}, {pipeline_mode = #tpu.pipeline_mode<synchronous>, transform_indices = @transform_2, window_bounds = array<i64: 32, 1>}, {transform_indices = @transform_3, window_bounds = array<i64: 1, 32, 256>}]} {
    %c0 = arith.constant 0 : index
    %c0_0 = arith.constant 0 : index
    %c0_1 = arith.constant 0 : index
    %0 = vector.load %arg1[%c0, %c0_0, %c0_1] : memref<1x3x273xf32, #tpu.memory_space<vmem>>, vector<1x3x273xf32>
    %1 = vector.shape_cast %0 : vector<1x3x273xf32> to vector<3x273xf32>
    %2 = vector.extract_strided_slice %1 {offsets = [0, 0], sizes = [3, 256], strides = [1, 1]} : vector<3x273xf32> to vector<3x256xf32>
    %3 = vector.extract_strided_slice %1 {offsets = [0, 1], sizes = [3, 256], strides = [1, 1]} : vector<3x273xf32> to vector<3x256xf32>
    %4 = vector.extract_strided_slice %1 {offsets = [0, 16], sizes = [3, 256], strides = [1, 1]} : vector<3x273xf32> to vector<3x256xf32>
    %5 = vector.extract_strided_slice %1 {offsets = [0, 17], sizes = [3, 256], strides = [1, 1]} : vector<3x273xf32> to vector<3x256xf32>
    %6 = tpu.concatenate %2, %3, %4, %5 in 0 : vector<3x256xf32>, vector<3x256xf32>, vector<3x256xf32>, vector<3x256xf32> -> vector<12x256xf32>
    %c0_2 = arith.constant 0 : index
    %c0_3 = arith.constant 0 : index
    %7 = vector.load %arg2[%c0_2, %c0_3] : memref<32x12xf32, #tpu.memory_space<vmem>>, vector<32x12xf32>
    %cst = arith.constant dense<0.000000e+00> : vector<32x256xf32>
    %8 = tpu.matmul %7, %6, %cst {dimension_numbers = #tpu.dot_dimension_numbers<[1], [0], [0], [1], [0, 0, 1, 1], [], []>} : vector<32x12xf32>, vector<12x256xf32>, vector<32x256xf32> -> vector<32x256xf32>
    %c0_4 = arith.constant 0 : index
    %c0_5 = arith.constant 0 : index
    %9 = vector.load %arg3[%c0_4, %c0_5] : memref<32x1xf32, #tpu.memory_space<vmem>>, vector<32x1xf32>
    %10 = vector.broadcast %9 : vector<32x1xf32> to vector<32x256xf32>
    %11 = arith.addf %8, %10 : vector<32x256xf32>
    %12 = math.tanh %11 : vector<32x256xf32>
    %c0_6 = arith.constant 0 : index
    %c0_7 = arith.constant 0 : index
    %c0_8 = arith.constant 0 : index
    %13 = vector.load %arg4[%c0_6, %c0_7, %c0_8] : memref<1x32x256xf32, #tpu.memory_space<vmem>>, vector<1x32x256xf32>
    %14 = vector.shape_cast %13 : vector<1x32x256xf32> to vector<32x256xf32>
    %15 = vector.shape_cast %12 : vector<32x256xf32> to vector<1x32x256xf32>
    tpu.vector_store %arg4[%c0_6, %c0_7, %c0_8], %15 {strides = array<i32>} : memref<1x32x256xf32, #tpu.memory_space<vmem>>, vector<1x32x256xf32>,
    return
  }
  func.func @transform_0(%arg0: i32) -> (i32, i32, i32) {
    %c0_i32 = arith.constant 0 : i32
    %c0_i32_0 = arith.constant 0 : i32
    %c0_i32_1 = arith.constant 0 : i32
    return %arg0, %c0_i32, %c0_i32_0 : i32, i32, i32
  }
  func.func @transform_1(%arg0: i32) -> (i32, i32) {
    %c0_i32 = arith.constant 0 : i32
    %c0_i32_0 = arith.constant 0 : i32
    %c0_i32_1 = arith.constant 0 : i32
    return %c0_i32, %c0_i32_0 : i32, i32
  }
  func.func @transform_2(%arg0: i32) -> (i32, i32) {
    %c0_i32 = arith.constant 0 : i32
    %c0_i32_0 = arith.constant 0 : i32
    %c0_i32_1 = arith.constant 0 : i32
    return %c0_i32, %c0_i32_0 : i32, i32
  }
  func.func @transform_3(%arg0: i32) -> (i32, i32, i32) {
    %c0_i32 = arith.constant 0 : i32
    %c0_i32_0 = arith.constant 0 : i32
    %c0_i32_1 = arith.constant 0 : i32
    return %arg0, %c0_i32, %c0_i32_0 : i32, i32, i32
  }
}

</mosaic_0001>

<llo_original>
// kernel: conv2d_tanh.1
$region0: #{conv2d_tanh.1}
  #allocation0 [shape = 'u32[]', space=smem, size = 0x4, offset = 0x4, fixed_abs, tag = 'smem constant byte address 0x4 - core index']
  #allocation1 [shape = 'u32[144,128]{1,0:T(1,128)}', space=vmem, size = 0x12000, scoped, tag = 'internal scratch']
  %s0 = inlined_call_operand.vmem [shape: f32[2,3,273], index: 0, kind: input, shape index: {}]
  %s1 = inlined_call_operand.vmem [shape: f32[32,12], index: 1, kind: input, shape index: {}]
  %s2 = inlined_call_operand.vmem [shape: f32[32,1], index: 2, kind: input, shape index: {}]
  %s3 = inlined_call_operand.vmem [shape: f32[2,32,256], index: 3, kind: output, shape index: {}]
  %s4 = sld [smem:[#allocation0]]
  $region45: #{conv2d_tanh.1} parent=0
    _
  %s6 = ssub.s32 1, %s4
  %s7 = scalar_select 0, %s6, %s4
  loop: start=0, step=1, limit=4
  $region2: #{conv2d_tanh.1} parent=0 // loop_pre_header
    _
  $region3: #{conv2d_tanh.1} parent=0 // loop_header
    %s9 = sphi 0, %s13
    %p10 = scmp.ge.s32.totalorder %s9, 4
    %s19 = sphi 0, %s21
    %s22 = sphi 0, %s19
    %s23 = sphi 0, %s22
    %s39 = sphi 0, %s23
    %s43 = sphi 0, %s43
    %s45 = sphi 0, %s43
    %s46 = sphi 0, %s45
    %s60 = sphi 0, %s46
    %s64 = sphi 0, %s64
    %s66 = sphi 0, %s64
    %s67 = sphi 0, %s66
    %s81 = sphi 0, %s67
    %s87 = sphi 0, %s89
    %s90 = sphi 0, %s87
    %s91 = sphi 0, %s90
    %s107 = sphi 0, %s91
  $region4: #{conv2d_tanh.1} parent=0 // loop_header_branch
    %12 = sbr.rel (%p10) target = $region8
  $region5: #{conv2d_tanh.1} parent=0 // loop_body
    %s14 = ssub.s32 %s9, 1
    %s15 = ssub.s32 %s9, 2
    %s16 = sadd.s32 %s9, 1
    %s17 = ssub.s32 %s9, %s16
    %p18 = scmp.eq.s32.totalorder %s17, 0
    %s20 = sadd.s32 %s19, 1
    %s21 = scalar_select %p18, %s19, %s20
    %p24 = pneg %p18
    %p25 = scmp.eq.s32.totalorder %s9, 1
    %p26 = por %p24, %p25
    %p27 = scmp.ne.s32.totalorder %s19, %s22
    %p28 = scmp.eq.s32.totalorder %s9, 0
    %p29 = por %p27, %p28
    %p30 = scmp.ne.s32.totalorder %s19, %s22
    %p31 = scmp.eq.s32.totalorder %s14, 1
    %p32 = por %p30, %p31
    %p33 = scmp.ne.s32.totalorder %s22, %s23
    %p34 = scmp.eq.s32.totalorder %s14, 0
    %p35 = por %p33, %p34
    %p36 = scmp.ne.s32.totalorder %s22, %s23
    %p37 = scmp.eq.s32.totalorder %s15, 1
    %p38 = por %p36, %p37
    %p40 = scmp.ne.s32.totalorder %s23, %s39
    %p41 = scmp.eq.s32.totalorder %s15, 0
    %p42 = por %p40, %p41
    %s44 = sadd.s32 %s43, 1
    %p47 = scmp.eq.s32.totalorder %s9, 1
    %p48 = scmp.ne.s32.totalorder %s43, %s45
    %p49 = scmp.eq.s32.totalorder %s9, 0
    %p50 = por %p48, %p49
    %p51 = scmp.ne.s32.totalorder %s43, %s45
    %p52 = scmp.eq.s32.totalorder %s14, 1
    %p53 = por %p51, %p52
    %p54 = scmp.ne.s32.totalorder %s45, %s46
    %p55 = scmp.eq.s32.totalorder %s14, 0
    %p56 = por %p54, %p55
    %p57 = scmp.ne.s32.totalorder %s45, %s46
    %p58 = scmp.eq.s32.totalorder %s15, 1
    %p59 = por %p57, %p58
    %p61 = scmp.ne.s32.totalorder %s46, %s60
    %p62 = scmp.eq.s32.totalorder %s15, 0
    %p63 = por %p61, %p62
    %s65 = sadd.s32 %s64, 1
    %p68 = scmp.eq.s32.totalorder %s9, 1
    %p69 = scmp.ne.s32.totalorder %s64, %s66
    %p70 = scmp.eq.s32.totalorder %s9, 0
    %p71 = por %p69, %p70
    %p72 = scmp.ne.s32.totalorder %s64, %s66
    %p73 = scmp.eq.s32.totalorder %s14, 1
    %p74 = por %p72, %p73
    %p75 = scmp.ne.s32.totalorder %s66, %s67
    %p76 = scmp.eq.s32.totalorder %s14, 0
    %p77 = por %p75, %p76
    %p78 = scmp.ne.s32.totalorder %s66, %s67
    %p79 = scmp.eq.s32.totalorder %s15, 1
    %p80 = por %p78, %p79
    %p82 = scmp.ne.s32.totalorder %s67, %s81
    %p83 = scmp.eq.s32.totalorder %s15, 0
    %p84 = por %p82, %p83
    %s85 = ssub.s32 %s9, %s16
    %p86 = scmp.eq.s32.totalorder %s85, 0
    %s88 = sadd.s32 %s87, 1
    %s89 = scalar_select %p86, %s87, %s88
    %p92 = pneg %p86
    %p93 = scmp.eq.s32.totalorder %s9, 1
    %p94 = por %p92, %p93
    %p95 = scmp.ne.s32.totalorder %s87, %s90
    %p96 = scmp.eq.s32.totalorder %s9, 0
    %p97 = por %p95, %p96
    %p98 = scmp.ne.s32.totalorder %s87, %s90
    %p99 = scmp.eq.s32.totalorder %s14, 1
    %p100 = por %p98, %p99
    %p101 = scmp.ne.s32.totalorder %s90, %s91
    %p102 = scmp.eq.s32.totalorder %s14, 0
    %p103 = por %p101, %p102
    %p104 = scmp.ne.s32.totalorder %s90, %s91
    %p105 = scmp.eq.s32.totalorder %s15, 1
    %p106 = por %p104, %p105
    %p108 = scmp.ne.s32.totalorder %s91, %s107
    %p109 = scmp.eq.s32.totalorder %s15, 0
    %p110 = por %p108, %p109
    %p111 = scmp.le.s32.totalorder 1, %s9
    %p112 = scmp.lt.s32.totalorder %s9, 3
    %p113 = pnand %p111, %p112
    %p114 = pneg %p113
    // Predicated region
    $region9: #{conv2d_tanh.1} parent=5 // pred_check
      _
    $region10: #{conv2d_tanh.1} parent=5 // pred_check_branch
      %116 = sbr.rel (%p113) target = $region12
    $region11: #{conv2d_tanh.1} parent=5 // pred_region
      %s117 = ssub.s32 %s9, 1
      // Predicated region
      $region13: #{conv2d_tanh.1} parent=11 // pred_check
        %p118 = pneg %p56
      $region14: #{conv2d_tanh.1} parent=11 // pred_check_branch
        %120 = sbr.rel (%p118) target = $region16
      $region15: #{conv2d_tanh.1} parent=11 // pred_region
        _
      $region16: #{conv2d_tanh.1} parent=11 // pred_fallthru
        _
      // Predicated region
      $region17: #{conv2d_tanh.1} parent=11 // pred_check
        %p121 = pneg %p77
      $region18: #{conv2d_tanh.1} parent=11 // pred_check_branch
        %123 = sbr.rel (%p121) target = $region20
      $region19: #{conv2d_tanh.1} parent=11 // pred_region
        _
      $region20: #{conv2d_tanh.1} parent=11 // pred_fallthru
        _
    $region12: #{conv2d_tanh.1} parent=5 // pred_fallthru
      _
    %p124 = scmp.lt.s32.totalorder %s9, 2
    // Predicated region
    $region21: #{conv2d_tanh.1} parent=5 // pred_check
      %p125 = pneg %p124
    $region22: #{conv2d_tanh.1} parent=5 // pred_check_branch
      %127 = sbr.rel (%p125) target = $region24
    $region23: #{conv2d_tanh.1} parent=5 // pred_region
      // Predicated region
      $region25: #{conv2d_tanh.1} parent=23 // pred_check
        %p128 = pneg %p29
      $region26: #{conv2d_tanh.1} parent=23 // pred_check_branch
        %130 = sbr.rel (%p128) target = $region28
      $region27: #{conv2d_tanh.1} parent=23 // pred_region
        %p131 = scmp.lt.s32.totalorder %s9, 1
        %s132 = scalar_select %p131, %s9, 1
        %s133 = smul.addr %s132, 3
        %s134 = smul.addr %s133, 4
        %s135 = scalar_lea.vmem %s0, %s134
      $region28: #{conv2d_tanh.1} parent=23 // pred_fallthru
        _
    $region24: #{conv2d_tanh.1} parent=5 // pred_fallthru
      _
    %p136 = scmp.le.s32.totalorder 1, %s9
    %p137 = scmp.lt.s32.totalorder %s9, 3
    %p138 = pnand %p136, %p137
    %p139 = pneg %p138
    // Predicated region
    $region29: #{conv2d_tanh.1} parent=5 // pred_check
      _
    $region30: #{conv2d_tanh.1} parent=5 // pred_check_branch
      %141 = sbr.rel (%p138) target = $region32
    $region31: #{conv2d_tanh.1} parent=5 // pred_region
      %s142 = ssub.s32 %s9, 1
      %p143 = scmp.lt.s32.totalorder %s14, 1
      %s144 = scalar_select %p143, %s14, 1
      %s145 = smul.addr %s144, 3
      %s146 = smul.addr %s145, 4
      %s147 = scalar_lea.vmem %s0, %s146
      %p148 = pneg %p35
      %p149 = pneg %p32
      %p150 = pneg %p56
      %p151 = pneg %p53
      %p152 = pneg %p77
      %p153 = pneg %p74
      %p154 = pneg %p103
      %p155 = pneg %p100
      %p156 = scmp.lt.s32.totalorder %s14, 1
      %s157 = scalar_select %p156, %s14, 1
      %s158 = smul.addr %s157, 8
      %s159 = smul.addr %s158, 8
      %s160 = scalar_lea.vmem %s3, %s159
      %p161 = scmp.lt.s32.totalorder %s14, 1
      %s162 = scalar_select %p161, %s14, 1
      %s163 = smul.addr %s162, 3
      %s164 = smul.addr %s163, 4
      %s165 = scalar_lea.vmem %s0, %s164
      %p166 = scmp.lt.s32.totalorder %s14, 1
      %s167 = scalar_select %p166, %s14, 1
      %s168 = smul.addr %s167, 8
      %s169 = smul.addr %s168, 8
      %s170 = scalar_lea.vmem %s3, %s169
      %v171 = vld [vmem:[%s165] sm:$0x77]
      %v172 = vld [vmem:[%s165 + $0x8] sm:$0x7]
      %v174 = vcombine.high %v171, %v171
      %v177 = vrot.slane %v171, 5
      %v178 = vrot.slane %v174, 5
      %v179 = vrot.slane %v172, 5
      %180 = vrot.lane.b32.xlu0 %v177, 127
      %v181 = vpop.permute.xlu0 %180
      %182 = vrot.lane.b32.xlu0 %v178, 127
      %v183 = vpop.permute.xlu0 %182
      %184 = vrot.lane.b32.xlu0 %v179, 127
      %v185 = vpop.permute.xlu0 %184
      %vm186 = vcmask 1039360
      %v187 = vsel %vm186, %v181, %v183
      %v188 = vsel %vm186, %v183, %v185
      %v191 = vrot.slane %v171, 2
      %v192 = vrot.slane %v174, 2
      %v193 = vrot.slane %v172, 2
      %194 = vrot.lane.b32.xlu0 %v191, 112
      %v195 = vpop.permute.xlu0 %194
      %196 = vrot.lane.b32.xlu0 %v192, 112
      %v197 = vpop.permute.xlu0 %196
      %198 = vrot.lane.b32.xlu0 %v193, 112
      %v199 = vpop.permute.xlu0 %198
      %vm200 = vcmask 916480
      %v201 = vsel %vm200, %v195, %v197
      %v202 = vsel %vm200, %v197, %v199
      %v205 = vrot.slane %v171, 7
      %v206 = vrot.slane %v174, 7
      %v207 = vrot.slane %v172, 7
      %208 = vrot.lane.b32.xlu0 %v205, 111
      %v209 = vpop.permute.xlu0 %208
      %210 = vrot.lane.b32.xlu0 %v206, 111
      %v211 = vpop.permute.xlu0 %210
      %212 = vrot.lane.b32.xlu0 %v207, 111
      %v213 = vpop.permute.xlu0 %212
      %vm214 = vcmask 908288
      %v215 = vsel %vm214, %v209, %v211
      %v216 = vsel %vm214, %v211, %v213
      %vm219 = vcmask 1042432
      %v220 = vsel %vm219, %v171, %v187
      %v221 = vsel %vm219, %v174, %v188
      %vm222 = vcmask 1045504
      %v223 = vsel %vm222, %v220, %v201
      %v224 = vsel %vm222, %v221, %v202
      %vm225 = vcmask 1040384
      %v226 = vsel %vm225, %v201, %v215
      %v227 = vsel %vm225, %v202, %v216
      %v228 = vld [vmem:[%s1] sm:$0xff]
      %v229 = vld [vmem:[%s1 + $0x8] sm:$0xff]
      %v230 = vld [vmem:[%s1 + $0x10] sm:$0xff]
      %v231 = vld [vmem:[%s1 + $0x18] sm:$0xff]
      %v232 = vld [vmem:[%s2] sm:$0xff]
      %v233 = vld [vmem:[%s2 + $0x8] sm:$0xff]
      %v234 = vld [vmem:[%s2 + $0x10] sm:$0xff]
      %v235 = vld [vmem:[%s2 + $0x18] sm:$0xff]
      %237 = vset.pattern.permute.xlu0 0
      %238 = vperm.xlu0 %237, %v232
      %v239 = vpop.permute.xlu0 %238
      %242 = vset.pattern.permute.xlu0 0
      %243 = vperm.xlu0 %242, %v233
      %v244 = vpop.permute.xlu0 %243
      %247 = vset.pattern.permute.xlu0 0
      %248 = vperm.xlu0 %247, %v234
      %v249 = vpop.permute.xlu0 %248
      %252 = vset.pattern.permute.xlu0 0
      %253 = vperm.xlu0 %252, %v235
      %v254 = vpop.permute.xlu0 %253
      %vm256 = vcmask 97280
      %v258 = vsel %vm256, %v228, 0
      %v261 = vsel %vm256, %v229, 0
      %v264 = vsel %vm256, %v230, 0
      %v267 = vsel %vm256, %v231, 0
      %vm269 = vcmask 1043456
      %v271 = vsel %vm269, %v226, 0
      %v274 = vsel %vm269, %v227, 0
      %276 = vmatprep.subr.mxu0 0.0
      %277 = vmatpush1.msra.mxu0 0.0
      %278 = vmatprep.subr.mxu0 0.0
      %279 = vmatpush1.msra.mxu0 0.0
      %280 = vmatprep.subr.mxu0 0.0
      %281 = vmatpush1.msra.mxu0 0.0
      %282 = vmatprep.subr.mxu0 0.0
      %283 = vmatpush1.msra.mxu0 0.0
      %284 = vmatprep.subr.mxu0 0.0
      %285 = vmatpush1.msra.mxu0 0.0
      %286 = vmatprep.subr.mxu0 0.0
      %287 = vmatpush1.msra.mxu0 0.0
      %288 = vmatprep.subr.mxu0 0.0
      %289 = vmatpush1.msra.mxu0 0.0
      %290 = vmatprep.subr.mxu0 0.0
      %291 = vmatpush1.msra.mxu0 0.0
      %292 = vmatprep.subr.mxu0 0.0
      %293 = vmatpush1.msra.mxu0 0.0
      %294 = vmatprep.subr.mxu0 0.0
      %295 = vmatpush1.msra.mxu0 0.0
      %296 = vmatprep.subr.mxu0 0.0
      %297 = vmatpush1.msra.mxu0 0.0
      %298 = vmatprep.subr.mxu0 0.0
      %299 = vmatpush1.msra.mxu0 0.0
      %300 = vmatprep.subr.mxu0 0.0
      %301 = vmatpush1.msra.mxu0 0.0
      %302 = vmatprep.subr.mxu0 0.0
      %303 = vmatpush1.msra.mxu0 0.0
      %304 = vmatprep.subr.mxu0 %v274
      %305 = vmatpush1.msra.mxu0 %v271
      %306 = vmatprep.subr.mxu0 %v224
      %307 = vmatpush1.msra.mxu0 %v223
      %308 = vmatprep.subr.mxu0 0.0
      %309 = vmatpush2.msra.mxu0 0.0
      %310 = vmatprep.subr.mxu0 0.0
      %311 = vmatpush2.msra.mxu0 0.0
      %312 = vmatprep.subr.mxu0 0.0
      %313 = vmatpush2.msra.mxu0 0.0
      %314 = vmatprep.subr.mxu0 0.0
      %315 = vmatpush2.msra.mxu0 0.0
      %316 = vmatprep.subr.mxu0 0.0
      %317 = vmatpush2.msra.mxu0 0.0
      %318 = vmatprep.subr.mxu0 0.0
      %319 = vmatpush2.msra.mxu0 0.0
      %320 = vmatprep.subr.mxu0 0.0
      %321 = vmatpush2.msra.mxu0 0.0
      %322 = vmatprep.subr.mxu0 0.0
      %323 = vmatpush2.msra.mxu0 0.0
      %324 = vmatprep.subr.mxu0 0.0
      %325 = vmatpush2.msra.mxu0 0.0
      %326 = vmatprep.subr.mxu0 0.0
      %327 = vmatpush2.msra.mxu0 0.0
      %328 = vmatprep.subr.mxu0 0.0
      %329 = vmatpush2.msra.mxu0 0.0
      %330 = vmatprep.subr.mxu0 0.0
      %331 = vmatpush2.msra.mxu0 0.0
      %332 = vmatprep.subr.mxu0 0.0
      %333 = vmatpush2.msra.mxu0 0.0
      %334 = vmatprep.subr.mxu0 0.0
      %335 = vmatpush2.msra.mxu0 0.0
      %336 = vmatprep.subr.mxu0 0.0
      %337 = vmatpush2.msra.mxu0 0.0
      %338 = vmatprep.subr.mxu0 0.0
      %339 = vmatpush2.msra.mxu0 0.0
      %340 = vmatprep.mubr.f32.mxu0 0.0
      %341 = vmatmul.mubr.f32.gmra.mxu0 %v258
      %v342 = vpop.f32.mrf.mxu0
      %v343 = vadd.f32 %v239, %v342
      %v344 = vpop.f32.mrf.mxu0
      %v345 = vadd.f32 %v239, %v344
      %346 = vmatprep.mubr.f32.mxu0 0.0
      %347 = vmatmul.mubr.f32.gmra.mxu0 %v261
      %v348 = vpop.f32.mrf.mxu0
      %v349 = vadd.f32 %v244, %v348
      %v350 = vpop.f32.mrf.mxu0
      %v351 = vadd.f32 %v244, %v350
      %352 = vmatprep.mubr.f32.mxu0 0.0
      %353 = vmatmul.mubr.f32.gmra.mxu0 %v264
      %v354 = vpop.f32.mrf.mxu0
      %v355 = vadd.f32 %v249, %v354
      %v356 = vpop.f32.mrf.mxu0
      %v357 = vadd.f32 %v249, %v356
      %358 = vmatprep.mubr.f32.mxu0 0.0
      %359 = vmatmul.mubr.f32.gmra.mxu0 %v267
      %v360 = vpop.f32.mrf.mxu0
      %v361 = vadd.f32 %v254, %v360
      %v362 = vpop.f32.mrf.mxu0
      %v363 = vadd.f32 %v254, %v362
      %364 = vdwg.mxu0
      %v365 = vtanh.pop %v343
      %v366 = vtanh.pop %v345
      %v367 = vtanh.pop %v349
      %v368 = vtanh.pop %v351
      %v369 = vtanh.pop %v355
      %v370 = vtanh.pop %v357
      %v371 = vtanh.pop %v361
      %v372 = vtanh.pop %v363
      %373 = vst [vmem:[%s170] sm:$0xff] %v365
      %374 = vst [vmem:[%s170 + $0x8] sm:$0xff] %v366
      %375 = vst [vmem:[%s170 + $0x10] sm:$0xff] %v367
      %376 = vst [vmem:[%s170 + $0x18] sm:$0xff] %v368
      %377 = vst [vmem:[%s170 + $0x20] sm:$0xff] %v369
      %378 = vst [vmem:[%s170 + $0x28] sm:$0xff] %v370
      %379 = vst [vmem:[%s170 + $0x30] sm:$0xff] %v371
      %380 = vst [vmem:[%s170 + $0x38] sm:$0xff] %v372
      %p381 = scmp.lt.s32.totalorder %s14, 1
      %s382 = scalar_select %p381, %s14, 1
      %s383 = smul.addr %s382, 8
      %s384 = smul.addr %s383, 8
      %s385 = scalar_lea.vmem %s3, %s384
      // Predicated region
      $region33: #{conv2d_tanh.1} parent=31 // pred_check
        %p386 = pneg %p100
      $region34: #{conv2d_tanh.1} parent=31 // pred_check_branch
        %388 = sbr.rel (%p386) target = $region36
      $region35: #{conv2d_tanh.1} parent=31 // pred_region
        _
      $region36: #{conv2d_tanh.1} parent=31 // pred_fallthru
        _
    $region32: #{conv2d_tanh.1} parent=5 // pred_fallthru
      _
    %p389 = scmp.le.s32.totalorder 2, %s9
    // Predicated region
    $region37: #{conv2d_tanh.1} parent=5 // pred_check
      %p390 = pneg %p389
    $region38: #{conv2d_tanh.1} parent=5 // pred_check_branch
      %392 = sbr.rel (%p390) target = $region40
    $region39: #{conv2d_tanh.1} parent=5 // pred_region
      %s393 = ssub.s32 %s9, 2
      // Predicated region
      $region41: #{conv2d_tanh.1} parent=39 // pred_check
        %p394 = pneg %p106
      $region42: #{conv2d_tanh.1} parent=39 // pred_check_branch
        %396 = sbr.rel (%p394) target = $region44
      $region43: #{conv2d_tanh.1} parent=39 // pred_region
        %p397 = scmp.lt.s32.totalorder %s15, 1
        %s398 = scalar_select %p397, %s15, 1
        %s399 = smul.addr %s398, 8
        %s400 = smul.addr %s399, 8
        %s401 = scalar_lea.vmem %s3, %s400
      $region44: #{conv2d_tanh.1} parent=39 // pred_fallthru
        _
    $region40: #{conv2d_tanh.1} parent=5 // pred_fallthru
      _
  $region6: #{conv2d_tanh.1} parent=0 // loop_footer
    %s13 = sadd.s32 1, %s9
  $region7: #{conv2d_tanh.1} parent=0 // loop_footer_branch
    %8 = sbr.rel target = $region3
  $region8: #{conv2d_tanh.1} parent=0 // loop_exit
    _

</llo_original>
